<compile_context>
chip_gen: v7x
topology: tpu7x:2x2x1
jax: 0.10.0
libtpu: 0.0.40
codegen_flags: <defaults>
</compile_context>

<pallas_src>
import functools

import jax
import jax.numpy as jnp
import numpy as np
from jax.experimental import pallas as pl
from jax.experimental.pallas import tpu as pltpu


def _final_layer_kernel(patch_ref, w_ref, p_ref, out_ref, *, eps):
    """One batch element per grid step.

    patch_ref: (1, 9*Cin, H*W) bf16  im2col of upsampled+padded input,
                                     spatial (H*W) on the lane axis.
    w_ref    : (Cout, 9*Cin)   bf16  conv weight with taps folded into K.
    p_ref    : (3, Cout, 1)    f32   packed [bias; gamma; beta].
    out_ref  : (1, Cout, H*W)  f32   channel-major, lane-dense output.
    """
    # 3x3 conv == a single MXU matmul with K = 9*Cin; f32 accumulation.
    acc = jnp.dot(w_ref[...], patch_ref[0],
                  preferred_element_type=jnp.float32)          # (Cout, H*W)
    acc = acc + p_ref[0]                                       # + bias (Cout,1)

    # GroupNorm(num_groups=1): statistics over ALL (Cout, H*W) elements of the
    # sample, then per-channel affine (gamma, beta broadcast along lanes).
    mean = jnp.mean(acc)
    var = jnp.mean(jnp.square(acc - mean))
    inv = jax.lax.rsqrt(var + eps)
    y = (acc - mean) * inv * p_ref[1] + p_ref[2]
    out_ref[0] = y.astype(out_ref.dtype)


def final_layer(x_nchw, skip_nchw, weight, bias, gamma, beta, *, eps=1e-5):
    """Forward pass of FinalLayer. x_nchw / skip_nchw: NCHW float32."""
    if skip_nchw is not None:
        x_nchw = jnp.concatenate([x_nchw, skip_nchw], axis=1)
    N, Cin, H0, W0 = x_nchw.shape
    Cout = weight.shape[0]
    assert weight.shape == (Cout, Cin, 3, 3)
    H, W = 2 * H0, 2 * W0
    HW = H * W

    # nn.Upsample(scale_factor=2) default mode='nearest', then conv padding=1.
    # Pure data-movement glue (upsample / pad / shift assembly) stays on the
    # XLA side so the kernel sees one lane-dense (9*Cin, H*W) operand and does
    # no unaligned in-kernel slicing.  (For large shapes this could be fused
    # further via a 4-phase subpixel decomposition of the upsample+conv.)
    x_up = jnp.repeat(jnp.repeat(x_nchw, 2, axis=2), 2, axis=3)
    x_pad = jnp.pad(x_up, ((0, 0), (0, 0), (1, 1), (1, 1)))

    taps = [x_pad[:, :, ky:ky + H, kx:kx + W]
            for ky in range(3) for kx in range(3)]             # 9 x (N,Cin,H,W)
    patches = (jnp.stack(taps, axis=1)                         # (N,9,Cin,H,W)
               .reshape(N, 9 * Cin, HW)
               .astype(jnp.bfloat16))                          # bf16 for MXU

    # (Cout, Cin, 3, 3) -> (Cout, ky, kx, Cin) -> (Cout, 9*Cin): matches the
    # tap-major / channel-minor K ordering of `patches`.
    w2 = (jnp.transpose(weight, (0, 2, 3, 1))
          .reshape(Cout, 9 * Cin)
          .astype(jnp.bfloat16))
    params = jnp.stack([bias, gamma, beta], axis=0).reshape(3, Cout, 1)
    params = params.astype(jnp.float32)

    kernel = functools.partial(_final_layer_kernel, eps=eps)

    y = pl.pallas_call(
        kernel,
        out_shape=jax.ShapeDtypeStruct((N, Cout, HW), jnp.float32),
        grid_spec=pltpu.PrefetchScalarGridSpec(
            num_scalar_prefetch=0,
            grid=(N,),                     # >=2 parallel steps (v7x: 2 TCs)
            in_specs=[
                pl.BlockSpec((1, 9 * Cin, HW), lambda n: (n, 0, 0)),
                pl.BlockSpec((Cout, 9 * Cin), lambda n: (0, 0)),
                pl.BlockSpec((3, Cout, 1), lambda n: (0, 0, 0)),
            ],
            out_specs=pl.BlockSpec((1, Cout, HW), lambda n: (n, 0, 0)),
        ),
        compiler_params=pltpu.CompilerParams(
            dimension_semantics=("parallel",)),
    )(patches, w2, params)

    # (N, Cout, H*W) -> (N, Cout, H, W): contiguous reshape, no transpose pass.
    return y.reshape(N, Cout, H, W)


def _reference(x_nchw, skip_nchw, weight, bias, gamma, beta, eps=1e-5):
    """Pure-JAX f32 reference matching PyTorch semantics (for verification)."""
    if skip_nchw is not None:
        x_nchw = jnp.concatenate([x_nchw, skip_nchw], axis=1)
    x_up = jnp.repeat(jnp.repeat(x_nchw, 2, axis=2), 2, axis=3)
    y = jax.lax.conv_general_dilated(
        x_up, weight, window_strides=(1, 1), padding=((1, 1), (1, 1)),
        dimension_numbers=("NCHW", "OIHW", "NCHW"))
    y = y + bias[None, :, None, None]
    mean = jnp.mean(y, axis=(1, 2, 3), keepdims=True)
    var = jnp.mean((y - mean) ** 2, axis=(1, 2, 3), keepdims=True)
    y = (y - mean) * jax.lax.rsqrt(var + eps)
    return y * gamma[None, :, None, None] + beta[None, :, None, None]


if __name__ == "__main__":
    # FinalLayer(in_size=8, out_size=4); x has 4 channels, skip has 4 channels.
    N, Cx, Cskip, H0, W0 = 2, 4, 4, 16, 16
    Cin, Cout = Cx + Cskip, 4

    key = jax.random.PRNGKey(0)
    kx, ks, kw, kb = jax.random.split(key, 4)
    x = jax.random.normal(kx, (N, Cx, H0, W0), jnp.float32)
    skip = jax.random.normal(ks, (N, Cskip, H0, W0), jnp.float32)

    # Deterministic parameter init (Conv2d kaiming-uniform-style bounds).
    fan_in = Cin * 3 * 3
    bound = 1.0 / np.sqrt(fan_in)
    weight = jax.random.uniform(kw, (Cout, Cin, 3, 3), jnp.float32,
                                minval=-bound, maxval=bound)
    bias = jax.random.uniform(kb, (Cout,), jnp.float32,
                              minval=-bound, maxval=bound)
    gamma = jnp.ones((Cout,), jnp.float32)   # GroupNorm default affine
    beta = jnp.zeros((Cout,), jnp.float32)

    out = jax.block_until_ready(final_layer(x, skip, weight, bias, gamma, beta))
    ref = jax.block_until_ready(_reference(x, skip, weight, bias, gamma, beta))

    assert out.shape == (N, Cout, 2 * H0, 2 * W0), out.shape
    # Tolerance reflects bf16 MXU inputs (f32 accumulation) vs. the f32
    # reference; observed error is ~1e-2 absolute at unit-scale GN outputs.
    np.testing.assert_allclose(np.asarray(out), np.asarray(ref),
                               rtol=3e-2, atol=3e-2)
    print("KERNEL_OK")
</pallas_src>

<mosaic_0001>
module attributes {stable_mosaic.version = 11 : i64} {
  func.func @_final_layer_kernel(%arg0: i32, %arg1: memref<1x72x1024xbf16, #tpu.memory_space<vmem>>, %arg2: memref<4x72xbf16, #tpu.memory_space<vmem>>, %arg3: memref<3x4x1xf32, #tpu.memory_space<vmem>>, %arg4: memref<1x4x1024xf32, #tpu.memory_space<vmem>>) attributes {dimension_semantics = [#tpu.dimension_semantics<parallel>], iteration_bounds = array<i64: 2>, scalar_prefetch = 0 : i64, scratch_operands = 0 : i64, tpu.core_type = #tpu.core_type<tc>, window_params = [{transform_indices = @transform_0, window_bounds = array<i64: 1, 72, 1024>}, {pipeline_mode = #tpu.pipeline_mode<synchronous>, transform_indices = @transform_1, window_bounds = array<i64: 4, 72>}, {pipeline_mode = #tpu.pipeline_mode<synchronous>, transform_indices = @transform_2, window_bounds = array<i64: 3, 4, 1>}, {transform_indices = @transform_3, window_bounds = array<i64: 1, 4, 1024>}]} {
    %c0 = arith.constant 0 : index
    %c0_0 = arith.constant 0 : index
    %0 = vector.load %arg2[%c0, %c0_0] : memref<4x72xbf16, #tpu.memory_space<vmem>>, vector<4x72xbf16>
    %c0_1 = arith.constant 0 : index
    %c0_2 = arith.constant 0 : index
    %c0_3 = arith.constant 0 : index
    %1 = vector.load %arg1[%c0_1, %c0_2, %c0_3] : memref<1x72x1024xbf16, #tpu.memory_space<vmem>>, vector<1x72x1024xbf16>
    %2 = vector.shape_cast %1 : vector<1x72x1024xbf16> to vector<72x1024xbf16>
    %cst = arith.constant dense<0.000000e+00> : vector<4x1024xf32>
    %3 = tpu.matmul %0, %2, %cst {dimension_numbers = #tpu.dot_dimension_numbers<[1], [0], [0], [1], [0, 0, 1, 1], [], []>} : vector<4x72xbf16>, vector<72x1024xbf16>, vector<4x1024xf32> -> vector<4x1024xf32>
    %c0_4 = arith.constant 0 : index
    %c0_5 = arith.constant 0 : index
    %c0_6 = arith.constant 0 : index
    %4 = vector.load %arg3[%c0_4, %c0_5, %c0_6] : memref<3x4x1xf32, #tpu.memory_space<vmem>>, vector<1x4x1xf32>
    %5 = vector.shape_cast %4 : vector<1x4x1xf32> to vector<4x1xf32>
    %6 = vector.broadcast %5 : vector<4x1xf32> to vector<4x1024xf32>
    %7 = arith.addf %3, %6 : vector<4x1024xf32>
    %8 = vector.shape_cast %7 : vector<4x1024xf32> to vector<1x4x1024xf32>
    %cst_7 = arith.constant dense<0.000000e+00> : vector<1xf32>
    %9 = vector.multi_reduction <add>, %8, %cst_7 [1, 2] : vector<1x4x1024xf32> to vector<1xf32>
    %10 = vector.shape_cast %9 : vector<1xf32> to vector<1x1x1xf32>
    %11 = vector.extract %10[0, 0, 0] : f32 from vector<1x1x1xf32>
    %cst_8 = arith.constant 4.096000e+03 : f32
    %12 = arith.divf %11, %cst_8 : f32
    %13 = vector.broadcast %12 : f32 to vector<4x1024xf32>
    %14 = arith.subf %7, %13 : vector<4x1024xf32>
    %15 = arith.mulf %14, %14 : vector<4x1024xf32>
    %16 = vector.shape_cast %15 : vector<4x1024xf32> to vector<1x4x1024xf32>
    %cst_9 = arith.constant dense<0.000000e+00> : vector<1xf32>
    %17 = vector.multi_reduction <add>, %16, %cst_9 [1, 2] : vector<1x4x1024xf32> to vector<1xf32>
    %18 = vector.shape_cast %17 : vector<1xf32> to vector<1x1x1xf32>
    %19 = vector.extract %18[0, 0, 0] : f32 from vector<1x1x1xf32>
    %cst_10 = arith.constant 4.096000e+03 : f32
    %20 = arith.divf %19, %cst_10 : f32
    %cst_11 = arith.constant 9.99999974E-6 : f32
    %21 = arith.addf %20, %cst_11 : f32
    %22 = math.rsqrt %21 : f32
    %23 = vector.broadcast %12 : f32 to vector<4x1024xf32>
    %24 = arith.subf %7, %23 : vector<4x1024xf32>
    %25 = vector.broadcast %22 : f32 to vector<4x1024xf32>
    %26 = arith.mulf %24, %25 : vector<4x1024xf32>
    %c1 = arith.constant 1 : index
    %c0_12 = arith.constant 0 : index
    %c0_13 = arith.constant 0 : index
    %27 = vector.load %arg3[%c1, %c0_12, %c0_13] : memref<3x4x1xf32, #tpu.memory_space<vmem>>, vector<1x4x1xf32>
    %28 = vector.shape_cast %27 : vector<1x4x1xf32> to vector<4x1xf32>
    %29 = vector.broadcast %28 : vector<4x1xf32> to vector<4x1024xf32>
    %30 = arith.mulf %26, %29 : vector<4x1024xf32>
    %c2 = arith.constant 2 : index
    %c0_14 = arith.constant 0 : index
    %c0_15 = arith.constant 0 : index
    %31 = vector.load %arg3[%c2, %c0_14, %c0_15] : memref<3x4x1xf32, #tpu.memory_space<vmem>>, vector<1x4x1xf32>
    %32 = vector.shape_cast %31 : vector<1x4x1xf32> to vector<4x1xf32>
    %33 = vector.broadcast %32 : vector<4x1xf32> to vector<4x1024xf32>
    %34 = arith.addf %30, %33 : vector<4x1024xf32>
    %c0_16 = arith.constant 0 : index
    %c0_17 = arith.constant 0 : index
    %c0_18 = arith.constant 0 : index
    %35 = vector.load %arg4[%c0_16, %c0_17, %c0_18] : memref<1x4x1024xf32, #tpu.memory_space<vmem>>, vector<1x4x1024xf32>
    %36 = vector.shape_cast %35 : vector<1x4x1024xf32> to vector<4x1024xf32>
    %37 = vector.shape_cast %34 : vector<4x1024xf32> to vector<1x4x1024xf32>
    tpu.vector_store %arg4[%c0_16, %c0_17, %c0_18], %37 {strides = array<i32>} : memref<1x4x1024xf32, #tpu.memory_space<vmem>>, vector<1x4x1024xf32>,
    return
  }
  func.func @transform_0(%arg0: i32) -> (i32, i32, i32) {
    %c0_i32 = arith.constant 0 : i32
    %c0_i32_0 = arith.constant 0 : i32
    %c0_i32_1 = arith.constant 0 : i32
    return %arg0, %c0_i32, %c0_i32_0 : i32, i32, i32
  }
  func.func @transform_1(%arg0: i32) -> (i32, i32) {
    %c0_i32 = arith.constant 0 : i32
    %c0_i32_0 = arith.constant 0 : i32
    %c0_i32_1 = arith.constant 0 : i32
    return %c0_i32, %c0_i32_0 : i32, i32
  }
  func.func @transform_2(%arg0: i32) -> (i32, i32, i32) {
    %c0_i32 = arith.constant 0 : i32
    %c0_i32_0 = arith.constant 0 : i32
    %c0_i32_1 = arith.constant 0 : i32
    %c0_i32_2 = arith.constant 0 : i32
    return %c0_i32, %c0_i32_0, %c0_i32_1 : i32, i32, i32
  }
  func.func @transform_3(%arg0: i32) -> (i32, i32, i32) {
    %c0_i32 = arith.constant 0 : i32
    %c0_i32_0 = arith.constant 0 : i32
    %c0_i32_1 = arith.constant 0 : i32
    return %arg0, %c0_i32, %c0_i32_0 : i32, i32, i32
  }
}

</mosaic_0001>

<llo_original>
// kernel: tpu_custom_call.1
$region0: #{tpu_custom_call.1}
  #allocation0 [shape = 'u32[]', space=smem, size = 0x4, offset = 0x4, fixed_abs, tag = 'smem constant byte address 0x4 - core index']
  #allocation1 [shape = 'u32[144,128]{1,0:T(1,128)}', space=vmem, size = 0x12000, scoped, tag = 'internal scratch']
  %s0 = inlined_call_operand.hbm [shape: bf16[2,72,1024], index: 0, kind: input, shape index: {}]
  %s1 = inlined_call_operand.vmem [shape: bf16[4,72], index: 1, kind: input, shape index: {}]
  %s2 = inlined_call_operand.vmem [shape: f32[3,4,1], index: 2, kind: input, shape index: {}]
  %s3 = inlined_call_operand.hbm [shape: f32[2,4,1024], index: 3, kind: output, shape index: {}]
  %s4 = sld [smem:[#allocation0]]
  $region49: #{tpu_custom_call.1} parent=0
    _
  %s6 = ssub.s32 1, %s4
  %s7 = scalar_select 0, %s6, %s4
  $region1: #{tpu_custom_call.1} parent=0
    #allocation2 [shape = 'u8[294912]{0}', space=vmem, size = 0x48000, scoped, tag = 'input window, operand 0']
    #allocation3 [shape = 's32[2]{0}', space=sflag, size = 0x8, scoped, tag = 'scoped memory for tpu_custom_call.1']
    #allocation4 [shape = 's32[2]{0}', space=sflag, size = 0x8, scoped, tag = 'scoped memory for tpu_custom_call.1']
    #allocation5 [shape = 'u8[32768]{0}', space=vmem, size = 0x8000, scoped, tag = 'output window, operand 0']
    %8 = vsyncpa [#allocation3], 0
    %s9 = scalar_lea.sflag [#allocation3], 1
    %10 = vsyncpa %s9, 0
    %11 = vsyncpa [#allocation4], 0
    %s12 = scalar_lea.sflag [#allocation4], 1
    %13 = vsyncpa %s12, 0
    loop: start=0, step=1, limit=4
    $region2: #{tpu_custom_call.1} parent=1 // loop_pre_header
      _
    $region3: #{tpu_custom_call.1} parent=1 // loop_header
      %s15 = sphi 0, %s19
      %p16 = scmp.ge.s32.totalorder %s15, 4
      %s25 = sphi 0, %s27
      %s28 = sphi 0, %s25
      %s29 = sphi 0, %s28
      %s45 = sphi 0, %s29
      %s49 = sphi 0, %s49
      %s51 = sphi 0, %s49
      %s52 = sphi 0, %s51
      %s66 = sphi 0, %s52
      %s70 = sphi 0, %s70
      %s72 = sphi 0, %s70
      %s73 = sphi 0, %s72
      %s87 = sphi 0, %s73
      %s93 = sphi 0, %s95
      %s96 = sphi 0, %s93
      %s97 = sphi 0, %s96
      %s113 = sphi 0, %s97
    $region4: #{tpu_custom_call.1} parent=1 // loop_header_branch
      %18 = sbr.rel (%p16) target = $region8
    $region5: #{tpu_custom_call.1} parent=1 // loop_body
      %s20 = ssub.s32 %s15, 1
      %s21 = ssub.s32 %s15, 2
      %s22 = sadd.s32 %s15, 1
      %s23 = ssub.s32 %s15, %s22
      %p24 = scmp.eq.s32.totalorder %s23, 0
      %s26 = sadd.s32 %s25, 1
      %s27 = scalar_select %p24, %s25, %s26
      %p30 = pneg %p24
      %p31 = scmp.eq.s32.totalorder %s15, 1
      %p32 = por %p30, %p31
      %p33 = scmp.ne.s32.totalorder %s25, %s28
      %p34 = scmp.eq.s32.totalorder %s15, 0
      %p35 = por %p33, %p34
      %p36 = scmp.ne.s32.totalorder %s25, %s28
      %p37 = scmp.eq.s32.totalorder %s20, 1
      %p38 = por %p36, %p37
      %p39 = scmp.ne.s32.totalorder %s28, %s29
      %p40 = scmp.eq.s32.totalorder %s20, 0
      %p41 = por %p39, %p40
      %p42 = scmp.ne.s32.totalorder %s28, %s29
      %p43 = scmp.eq.s32.totalorder %s21, 1
      %p44 = por %p42, %p43
      %p46 = scmp.ne.s32.totalorder %s29, %s45
      %p47 = scmp.eq.s32.totalorder %s21, 0
      %p48 = por %p46, %p47
      %s50 = sadd.s32 %s49, 1
      %p53 = scmp.eq.s32.totalorder %s15, 1
      %p54 = scmp.ne.s32.totalorder %s49, %s51
      %p55 = scmp.eq.s32.totalorder %s15, 0
      %p56 = por %p54, %p55
      %p57 = scmp.ne.s32.totalorder %s49, %s51
      %p58 = scmp.eq.s32.totalorder %s20, 1
      %p59 = por %p57, %p58
      %p60 = scmp.ne.s32.totalorder %s51, %s52
      %p61 = scmp.eq.s32.totalorder %s20, 0
      %p62 = por %p60, %p61
      %p63 = scmp.ne.s32.totalorder %s51, %s52
      %p64 = scmp.eq.s32.totalorder %s21, 1
      %p65 = por %p63, %p64
      %p67 = scmp.ne.s32.totalorder %s52, %s66
      %p68 = scmp.eq.s32.totalorder %s21, 0
      %p69 = por %p67, %p68
      %s71 = sadd.s32 %s70, 1
      %p74 = scmp.eq.s32.totalorder %s15, 1
      %p75 = scmp.ne.s32.totalorder %s70, %s72
      %p76 = scmp.eq.s32.totalorder %s15, 0
      %p77 = por %p75, %p76
      %p78 = scmp.ne.s32.totalorder %s70, %s72
      %p79 = scmp.eq.s32.totalorder %s20, 1
      %p80 = por %p78, %p79
      %p81 = scmp.ne.s32.totalorder %s72, %s73
      %p82 = scmp.eq.s32.totalorder %s20, 0
      %p83 = por %p81, %p82
      %p84 = scmp.ne.s32.totalorder %s72, %s73
      %p85 = scmp.eq.s32.totalorder %s21, 1
      %p86 = por %p84, %p85
      %p88 = scmp.ne.s32.totalorder %s73, %s87
      %p89 = scmp.eq.s32.totalorder %s21, 0
      %p90 = por %p88, %p89
      %s91 = ssub.s32 %s15, %s22
      %p92 = scmp.eq.s32.totalorder %s91, 0
      %s94 = sadd.s32 %s93, 1
      %s95 = scalar_select %p92, %s93, %s94
      %p98 = pneg %p92
      %p99 = scmp.eq.s32.totalorder %s15, 1
      %p100 = por %p98, %p99
      %p101 = scmp.ne.s32.totalorder %s93, %s96
      %p102 = scmp.eq.s32.totalorder %s15, 0
      %p103 = por %p101, %p102
      %p104 = scmp.ne.s32.totalorder %s93, %s96
      %p105 = scmp.eq.s32.totalorder %s20, 1
      %p106 = por %p104, %p105
      %p107 = scmp.ne.s32.totalorder %s96, %s97
      %p108 = scmp.eq.s32.totalorder %s20, 0
      %p109 = por %p107, %p108
      %p110 = scmp.ne.s32.totalorder %s96, %s97
      %p111 = scmp.eq.s32.totalorder %s21, 1
      %p112 = por %p110, %p111
      %p114 = scmp.ne.s32.totalorder %s97, %s113
      %p115 = scmp.eq.s32.totalorder %s21, 0
      %p116 = por %p114, %p115
      %p117 = scmp.le.s32.totalorder 1, %s15
      %p118 = scmp.lt.s32.totalorder %s15, 3
      %p119 = pnand %p117, %p118
      %p120 = pneg %p119
      // Predicated region
      $region9: #{tpu_custom_call.1} parent=5 // pred_check
        _
      $region10: #{tpu_custom_call.1} parent=5 // pred_check_branch
        %122 = sbr.rel (%p119) target = $region12
      $region11: #{tpu_custom_call.1} parent=5 // pred_region
        %s123 = ssub.s32 %s15, 1
        // Predicated region
        $region13: #{tpu_custom_call.1} parent=11 // pred_check
          %p124 = pneg %p62
        $region14: #{tpu_custom_call.1} parent=11 // pred_check_branch
          %126 = sbr.rel (%p124) target = $region16
        $region15: #{tpu_custom_call.1} parent=11 // pred_region
          _
        $region16: #{tpu_custom_call.1} parent=11 // pred_fallthru
          _
        // Predicated region
        $region17: #{tpu_custom_call.1} parent=11 // pred_check
          %p127 = pneg %p83
        $region18: #{tpu_custom_call.1} parent=11 // pred_check_branch
          %129 = sbr.rel (%p127) target = $region20
        $region19: #{tpu_custom_call.1} parent=11 // pred_region
          _
        $region20: #{tpu_custom_call.1} parent=11 // pred_fallthru
          _
      $region12: #{tpu_custom_call.1} parent=5 // pred_fallthru
        _
      %p130 = scmp.lt.s32.totalorder %s15, 2
      // Predicated region
      $region21: #{tpu_custom_call.1} parent=5 // pred_check
        %p131 = pneg %p130
      $region22: #{tpu_custom_call.1} parent=5 // pred_check_branch
        %133 = sbr.rel (%p131) target = $region24
      $region23: #{tpu_custom_call.1} parent=5 // pred_region
        // Predicated region
        $region25: #{tpu_custom_call.1} parent=23 // pred_check
          %p134 = pneg %p35
        $region26: #{tpu_custom_call.1} parent=23 // pred_check_branch
          %136 = sbr.rel (%p134) target = $region28
        $region27: #{tpu_custom_call.1} parent=23 // pred_region
          %s137 = sand.u32 %s25, 1
          %s138 = scalar_lea.sflag [#allocation3], %s137
          %s139 = sand.u32 %s25, 1
          %s140 = smul.addr %s139, 288
          %s141 = scalar_lea.vmem [#allocation2], %s140
          %s143 = ssub.s32 4608, 4608
          %144 = vsyncadd %s138, %s143
          %s145 = smul.addr %s15, 72
          %s146 = smul.addr %s145, 64
          %s147 = scalar_lea.hbm %s0, %s146
          %s148 = sshll.u32 %s141, 4
          %s149 = int_to_ptr.vmem [resolvable:$true] %s148
          %154 = dma.hbm_to_vmem [thread:$0]  %s147, 4608, %s149, %s138, 512, 512, 32
        $region28: #{tpu_custom_call.1} parent=23 // pred_fallthru
          _
      $region24: #{tpu_custom_call.1} parent=5 // pred_fallthru
        _
      %p155 = scmp.le.s32.totalorder 1, %s15
      %p156 = scmp.lt.s32.totalorder %s15, 3
      %p157 = pnand %p155, %p156
      %p158 = pneg %p157
      // Predicated region
      $region29: #{tpu_custom_call.1} parent=5 // pred_check
        _
      $region30: #{tpu_custom_call.1} parent=5 // pred_check_branch
        %160 = sbr.rel (%p157) target = $region32
      $region31: #{tpu_custom_call.1} parent=5 // pred_region
        %s161 = ssub.s32 %s15, 1
        %s162 = sand.u32 %s28, 1
        %s163 = scalar_lea.sflag [#allocation3], %s162
        %s164 = sand.u32 %s28, 1
        %s165 = smul.addr %s164, 288
        %s166 = scalar_lea.vmem [#allocation2], %s165
        // Predicated region
        $region33: #{tpu_custom_call.1} parent=31 // pred_check
          %p167 = pneg %p41
        $region34: #{tpu_custom_call.1} parent=31 // pred_check_branch
          %169 = sbr.rel (%p167) target = $region36
        $region35: #{tpu_custom_call.1} parent=31 // pred_region
          %170 = dma.done %s163, 4608
        $region36: #{tpu_custom_call.1} parent=31 // pred_fallthru
          _
        %s171 = sand.u32 %s28, 1
        %s172 = scalar_lea.sflag [#allocation3], %s171
        %s173 = sand.u32 %s28, 1
        %s174 = smul.addr %s173, 288
        %s175 = scalar_lea.vmem [#allocation2], %s174
        %p176 = pneg %p41
        %p177 = pneg %p38
        %p178 = pneg %p62
        %p179 = pneg %p59
        %p180 = pneg %p83
        %p181 = pneg %p80
        %p182 = pneg %p109
        %p183 = pneg %p106
        %s184 = sand.u32 %s96, 1
        %s185 = scalar_lea.sflag [#allocation4], %s184
        %s186 = sand.u32 %s96, 1
        %s187 = smul.addr %s186, 32
        %s188 = scalar_lea.vmem [#allocation5], %s187
        %v190 = vld [vmem:[%s1] sm:$0x3]
        %v191 = vld [vmem:[%s166] sm:$0xff]
        %v192 = vld [vmem:[%s166 + $0x8] sm:$0xff]
        %v193 = vld [vmem:[%s166 + $0x10] sm:$0xff]
        %v194 = vld [vmem:[%s166 + $0x18] sm:$0xff]
        %v195 = vld [vmem:[%s166 + $0x20] sm:$0xff]
        %v196 = vld [vmem:[%s166 + $0x28] sm:$0xff]
        %v197 = vld [vmem:[%s166 + $0x30] sm:$0xff]
        %v198 = vld [vmem:[%s166 + $0x38] sm:$0xff]
        %v199 = vld [vmem:[%s166 + $0x40] sm:$0xff]
        %v200 = vld [vmem:[%s166 + $0x48] sm:$0xff]
        %v201 = vld [vmem:[%s166 + $0x50] sm:$0xff]
        %v202 = vld [vmem:[%s166 + $0x58] sm:$0xff]
        %v203 = vld [vmem:[%s166 + $0x60] sm:$0xff]
        %v204 = vld [vmem:[%s166 + $0x68] sm:$0xff]
        %v205 = vld [vmem:[%s166 + $0x70] sm:$0xff]
        %v206 = vld [vmem:[%s166 + $0x78] sm:$0xff]
        %v207 = vld [vmem:[%s166 + $0x80] sm:$0xff]
        %v208 = vld [vmem:[%s166 + $0x88] sm:$0xff]
        %v209 = vld [vmem:[%s166 + $0x90] sm:$0xff]
        %v210 = vld [vmem:[%s166 + $0x98] sm:$0xff]
        %v211 = vld [vmem:[%s166 + $0xa0] sm:$0xff]
        %v212 = vld [vmem:[%s166 + $0xa8] sm:$0xff]
        %v213 = vld [vmem:[%s166 + $0xb0] sm:$0xff]
        %v214 = vld [vmem:[%s166 + $0xb8] sm:$0xff]
        %v215 = vld [vmem:[%s166 + $0xc0] sm:$0xff]
        %v216 = vld [vmem:[%s166 + $0xc8] sm:$0xff]
        %v217 = vld [vmem:[%s166 + $0xd0] sm:$0xff]
        %v218 = vld [vmem:[%s166 + $0xd8] sm:$0xff]
        %v219 = vld [vmem:[%s166 + $0xe0] sm:$0xff]
        %v220 = vld [vmem:[%s166 + $0xe8] sm:$0xff]
        %v221 = vld [vmem:[%s166 + $0xf0] sm:$0xff]
        %v222 = vld [vmem:[%s166 + $0xf8] sm:$0xff]
        %v223 = vld [vmem:[%s166 + $0x100] sm:$0xff]
        %v224 = vld [vmem:[%s166 + $0x108] sm:$0xff]
        %v225 = vld [vmem:[%s166 + $0x110] sm:$0xff]
        %v226 = vld [vmem:[%s166 + $0x118] sm:$0xff]
        %v227 = vld [vmem:[%s2] sm:$0xf]
        %229 = vset.pattern.permute.xlu0 0
        %230 = vperm.xlu0 %229, %v227
        %v231 = vpop.permute.xlu0 %230
        %v269 = vunpack.c.l.b16 %v191
        %v270 = vunpack.c.h.b16 %v191
        %v271 = vunpack.c.l.b16 %v192
        %v272 = vunpack.c.h.b16 %v192
        %v273 = vunpack.c.l.b16 %v193
        %v274 = vunpack.c.h.b16 %v193
        %v275 = vunpack.c.l.b16 %v194
        %v276 = vunpack.c.h.b16 %v194
        %v277 = vunpack.c.l.b16 %v195
        %v278 = vunpack.c.h.b16 %v195
        %v279 = vunpack.c.l.b16 %v196
        %v280 = vunpack.c.h.b16 %v196
        %v281 = vunpack.c.l.b16 %v197
        %v282 = vunpack.c.h.b16 %v197
        %v283 = vunpack.c.l.b16 %v198
        %v284 = vunpack.c.h.b16 %v198
        %v285 = vunpack.c.l.b16 %v199
        %v286 = vunpack.c.h.b16 %v199
        %v287 = vunpack.c.l.b16 %v200
        %v288 = vunpack.c.h.b16 %v200
        %v289 = vunpack.c.l.b16 %v201
        %v290 = vunpack.c.h.b16 %v201
        %v291 = vunpack.c.l.b16 %v202
        %v292 = vunpack.c.h.b16 %v202
        %v293 = vunpack.c.l.b16 %v203
        %v294 = vunpack.c.h.b16 %v203
        %v295 = vunpack.c.l.b16 %v204
        %v296 = vunpack.c.h.b16 %v204
        %v297 = vunpack.c.l.b16 %v205
        %v298 = vunpack.c.h.b16 %v205
        %v299 = vunpack.c.l.b16 %v206
        %v300 = vunpack.c.h.b16 %v206
        %v301 = vunpack.c.l.b16 %v207
        %v302 = vunpack.c.h.b16 %v207
        %v303 = vunpack.c.l.b16 %v208
        %v304 = vunpack.c.h.b16 %v208
        %v305 = vunpack.c.l.b16 %v209
        %v306 = vunpack.c.h.b16 %v209
        %v307 = vunpack.c.l.b16 %v210
        %v308 = vunpack.c.h.b16 %v210
        %v309 = vunpack.c.l.b16 %v211
        %v310 = vunpack.c.h.b16 %v211
        %v311 = vunpack.c.l.b16 %v212
        %v312 = vunpack.c.h.b16 %v212
        %v313 = vunpack.c.l.b16 %v213
        %v314 = vunpack.c.h.b16 %v213
        %v315 = vunpack.c.l.b16 %v214
        %v316 = vunpack.c.h.b16 %v214
        %v317 = vunpack.c.l.b16 %v215
        %v318 = vunpack.c.h.b16 %v215
        %v319 = vunpack.c.l.b16 %v216
        %v320 = vunpack.c.h.b16 %v216
        %v321 = vunpack.c.l.b16 %v217
        %v322 = vunpack.c.h.b16 %v217
        %v323 = vunpack.c.l.b16 %v218
        %v324 = vunpack.c.h.b16 %v218
        %v325 = vunpack.c.l.b16 %v219
        %v326 = vunpack.c.h.b16 %v219
        %v327 = vunpack.c.l.b16 %v220
        %v328 = vunpack.c.h.b16 %v220
        %v329 = vunpack.c.l.b16 %v221
        %v330 = vunpack.c.h.b16 %v221
        %v331 = vunpack.c.l.b16 %v222
        %v332 = vunpack.c.h.b16 %v222
        %v333 = vunpack.c.l.b16 %v223
        %v334 = vunpack.c.h.b16 %v223
        %v335 = vunpack.c.l.b16 %v224
        %v336 = vunpack.c.h.b16 %v224
        %v337 = vunpack.c.l.b16 %v225
        %v338 = vunpack.c.h.b16 %v225
        %v339 = vunpack.c.l.b16 %v226
        %v340 = vunpack.c.h.b16 %v226
        %v341 = vpack.c.b16 %v277, %v269
        %v342 = vpack.c.b16 %v278, %v270
        %v343 = vpack.c.b16 %v279, %v271
        %v344 = vpack.c.b16 %v280, %v272
        %v345 = vpack.c.b16 %v281, %v273
        %v346 = vpack.c.b16 %v282, %v274
        %v347 = vpack.c.b16 %v283, %v275
        %v348 = vpack.c.b16 %v284, %v276
        %v349 = vpack.c.b16 %v293, %v285
        %v350 = vpack.c.b16 %v294, %v286
        %v351 = vpack.c.b16 %v295, %v287
        %v352 = vpack.c.b16 %v296, %v288
        %v353 = vpack.c.b16 %v297, %v289
        %v354 = vpack.c.b16 %v298, %v290
        %v355 = vpack.c.b16 %v299, %v291
        %v356 = vpack.c.b16 %v300, %v292
        %v357 = vpack.c.b16 %v309, %v301
        %v358 = vpack.c.b16 %v310, %v302
        %v359 = vpack.c.b16 %v311, %v303
        %v360 = vpack.c.b16 %v312, %v304
        %v361 = vpack.c.b16 %v313, %v305
        %v362 = vpack.c.b16 %v314, %v306
        %v363 = vpack.c.b16 %v315, %v307
        %v364 = vpack.c.b16 %v316, %v308
        %v365 = vpack.c.b16 %v325, %v317
        %v366 = vpack.c.b16 %v326, %v318
        %v367 = vpack.c.b16 %v327, %v319
        %v368 = vpack.c.b16 %v328, %v320
        %v369 = vpack.c.b16 %v329, %v321
        %v370 = vpack.c.b16 %v330, %v322
        %v371 = vpack.c.b16 %v331, %v323
        %v372 = vpack.c.b16 %v332, %v324
        %v373 = vpack.c.b16 %v333, %v333
        %v374 = vpack.c.b16 %v334, %v334
        %v375 = vpack.c.b16 %v335, %v335
        %v376 = vpack.c.b16 %v336, %v336
        %v377 = vpack.c.b16 %v337, %v337
        %v378 = vpack.c.b16 %v338, %v338
        %v379 = vpack.c.b16 %v339, %v339
        %v380 = vpack.c.b16 %v340, %v340
        %vm413 = vcmask 588800
        %v415 = vsel %vm413, %v190, 0
        %vm417 = vcmask 1043456
        %v419 = vsel %vm417, %v373, 0
        %v422 = vsel %vm417, %v374, 0
        %v425 = vsel %vm417, %v375, 0
        %v428 = vsel %vm417, %v376, 0
        %v431 = vsel %vm417, %v377, 0
        %v434 = vsel %vm417, %v378, 0
        %v437 = vsel %vm417, %v379, 0
        %v440 = vsel %vm417, %v380, 0
        %442 = vmatprep.subr.bf16.mxu0 %v342
        %443 = vmatpush1.bf16.msra.mxu0 %v341
        %444 = vmatprep.subr.bf16.mxu0 %v350
        %445 = vmatpush1.bf16.msra.mxu0 %v349
        %446 = vmatprep.subr.bf16.mxu0 %v358
        %447 = vmatpush1.bf16.msra.mxu0 %v357
        %448 = vmatprep.subr.bf16.mxu0 %v366
        %449 = vmatpush1.bf16.msra.mxu0 %v365
        %450 = vmatprep.subr.bf16.mxu0 %v422
        %451 = vmatpush1.bf16.msra.mxu0 %v419
        %452 = vmatprep.subr.bf16.mxu0 0
        %453 = vmatpush1.bf16.msra.mxu0 0
        %454 = vmatprep.subr.bf16.mxu0 0
        %455 = vmatpush1.bf16.msra.mxu0 0
        %456 = vmatprep.subr.bf16.mxu0 0
        %457 = vmatpush1.bf16.msra.mxu0 0
        %458 = vmatprep.subr.bf16.mxu0 0
        %459 = vmatpush1.bf16.msra.mxu0 0
        %460 = vmatprep.subr.bf16.mxu0 0
        %461 = vmatpush1.bf16.msra.mxu0 0
        %462 = vmatprep.subr.bf16.mxu0 0
        %463 = vmatpush1.bf16.msra.mxu0 0
        %464 = vmatprep.subr.bf16.mxu0 0
        %465 = vmatpush1.bf16.msra.mxu0 0
        %466 = vmatprep.subr.bf16.mxu0 0
        %467 = vmatpush1.bf16.msra.mxu0 0
        %468 = vmatprep.subr.bf16.mxu0 0
        %469 = vmatpush1.bf16.msra.mxu0 0
        %470 = vmatprep.subr.bf16.mxu0 0
        %471 = vmatpush1.bf16.msra.mxu0 0
        %472 = vmatprep.subr.bf16.mxu0 0
        %473 = vmatpush1.bf16.msra.mxu0 0
        %474 = vmatprep.mubr.bf16.mxu0 0
        %475 = vmatmul.mubr.bf16.gmra.mrb[0].mxu0 %v415
        %v476 = vpop.f32.mrb[0].mxu0
        %v477 = vadd.f32 %v231, %v476
        %v478 = vpop.f32.mrb[0].mxu0
        %v479 = vadd.f32 %v231, %v478
        %v480 = vpop.f32.mrb[0].mxu0
        %v481 = vpop.f32.mrb[0].mxu0
        %482 = vdwg.mxu0
        %483 = vmatprep.subr.bf16.mxu0 %v344
        %484 = vmatpush1.bf16.msra.mxu0 %v343
        %485 = vmatprep.subr.bf16.mxu0 %v352
        %486 = vmatpush1.bf16.msra.mxu0 %v351
        %487 = vmatprep.subr.bf16.mxu0 %v360
        %488 = vmatpush1.bf16.msra.mxu0 %v359
        %489 = vmatprep.subr.bf16.mxu0 %v368
        %490 = vmatpush1.bf16.msra.mxu0 %v367
        %491 = vmatprep.subr.bf16.mxu0 %v428
        %492 = vmatpush1.bf16.msra.mxu0 %v425
        %493 = vmatprep.subr.bf16.mxu0 0
        %494 = vmatpush1.bf16.msra.mxu0 0
        %495 = vmatprep.subr.bf16.mxu0 0
        %496 = vmatpush1.bf16.msra.mxu0 0
        %497 = vmatprep.subr.bf16.mxu0 0
        %498 = vmatpush1.bf16.msra.mxu0 0
        %499 = vmatprep.subr.bf16.mxu0 0
        %500 = vmatpush1.bf16.msra.mxu0 0
        %501 = vmatprep.subr.bf16.mxu0 0
        %502 = vmatpush1.bf16.msra.mxu0 0
        %503 = vmatprep.subr.bf16.mxu0 0
        %504 = vmatpush1.bf16.msra.mxu0 0
        %505 = vmatprep.subr.bf16.mxu0 0
        %506 = vmatpush1.bf16.msra.mxu0 0
        %507 = vmatprep.subr.bf16.mxu0 0
        %508 = vmatpush1.bf16.msra.mxu0 0
        %509 = vmatprep.subr.bf16.mxu0 0
        %510 = vmatpush1.bf16.msra.mxu0 0
        %511 = vmatprep.subr.bf16.mxu0 0
        %512 = vmatpush1.bf16.msra.mxu0 0
        %513 = vmatprep.subr.bf16.mxu0 0
        %514 = vmatpush1.bf16.msra.mxu0 0
        %515 = vmatprep.mubr.bf16.mxu0 0
        %516 = vmatmul.mubr.bf16.gmra.mrb[0].mxu0 %v415
        %v517 = vpop.f32.mrb[0].mxu0
        %v518 = vadd.f32 %v231, %v517
        %v519 = vpop.f32.mrb[0].mxu0
        %v520 = vadd.f32 %v231, %v519
        %v521 = vpop.f32.mrb[0].mxu0
        %v522 = vpop.f32.mrb[0].mxu0
        %523 = vdwg.mxu0
        %524 = vmatprep.subr.bf16.mxu0 %v346
        %525 = vmatpush1.bf16.msra.mxu0 %v345
        %526 = vmatprep.subr.bf16.mxu0 %v354
        %527 = vmatpush1.bf16.msra.mxu0 %v353
        %528 = vmatprep.subr.bf16.mxu0 %v362
        %529 = vmatpush1.bf16.msra.mxu0 %v361
        %530 = vmatprep.subr.bf16.mxu0 %v370
        %531 = vmatpush1.bf16.msra.mxu0 %v369
        %532 = vmatprep.subr.bf16.mxu0 %v434
        %533 = vmatpush1.bf16.msra.mxu0 %v431
        %534 = vmatprep.subr.bf16.mxu0 0
        %535 = vmatpush1.bf16.msra.mxu0 0
        %536 = vmatprep.subr.bf16.mxu0 0
        %537 = vmatpush1.bf16.msra.mxu0 0
        %538 = vmatprep.subr.bf16.mxu0 0
        %539 = vmatpush1.bf16.msra.mxu0 0
        %540 = vmatprep.subr.bf16.mxu0 0
        %541 = vmatpush1.bf16.msra.mxu0 0
        %542 = vmatprep.subr.bf16.mxu0 0
        %543 = vmatpush1.bf16.msra.mxu0 0
        %544 = vmatprep.subr.bf16.mxu0 0
        %545 = vmatpush1.bf16.msra.mxu0 0
        %546 = vmatprep.subr.bf16.mxu0 0
        %547 = vmatpush1.bf16.msra.mxu0 0
        %548 = vmatprep.subr.bf16.mxu0 0
        %549 = vmatpush1.bf16.msra.mxu0 0
        %550 = vmatprep.subr.bf16.mxu0 0
        %551 = vmatpush1.bf16.msra.mxu0 0
        %552 = vmatprep.subr.bf16.mxu0 0
        %553 = vmatpush1.bf16.msra.mxu0 0
        %554 = vmatprep.subr.bf16.mxu0 0
        %555 = vmatpush1.bf16.msra.mxu0 0
        %556 = vmatprep.mubr.bf16.mxu0 0
        %557 = vmatmul.mubr.bf16.gmra.mrb[0].mxu0 %v415
        %v558 = vpop.f32.mrb[0].mxu0
        %v559 = vadd.f32 %v231, %v558
        %v560 = vpop.f32.mrb[0].mxu0
        %v561 = vadd.f32 %v231, %v560
        %v562 = vpop.f32.mrb[0].mxu0
        %v563 = vpop.f32.mrb[0].mxu0
        %564 = vdwg.mxu0
        %565 = vmatprep.subr.bf16.mxu0 %v348
        %566 = vmatpush1.bf16.msra.mxu0 %v347
        %567 = vmatprep.subr.bf16.mxu0 %v356
        %568 = vmatpush1.bf16.msra.mxu0 %v355
        %569 = vmatprep.subr.bf16.mxu0 %v364
        %570 = vmatpush1.bf16.msra.mxu0 %v363
        %571 = vmatprep.subr.bf16.mxu0 %v372
        %572 = vmatpush1.bf16.msra.mxu0 %v371
        %573 = vmatprep.subr.bf16.mxu0 %v440
        %574 = vmatpush1.bf16.msra.mxu0 %v437
        %575 = vmatprep.subr.bf16.mxu0 0
        %576 = vmatpush1.bf16.msra.mxu0 0
        %577 = vmatprep.subr.bf16.mxu0 0
        %578 = vmatpush1.bf16.msra.mxu0 0
        %579 = vmatprep.subr.bf16.mxu0 0
        %580 = vmatpush1.bf16.msra.mxu0 0
        %581 = vmatprep.subr.bf16.mxu0 0
        %582 = vmatpush1.bf16.msra.mxu0 0
        %583 = vmatprep.subr.bf16.mxu0 0
        %584 = vmatpush1.bf16.msra.mxu0 0
        %585 = vmatprep.subr.bf16.mxu0 0
        %586 = vmatpush1.bf16.msra.mxu0 0
        %587 = vmatprep.subr.bf16.mxu0 0
        %588 = vmatpush1.bf16.msra.mxu0 0
        %589 = vmatprep.subr.bf16.mxu0 0
        %590 = vmatpush1.bf16.msra.mxu0 0
        %591 = vmatprep.subr.bf16.mxu0 0
        %592 = vmatpush1.bf16.msra.mxu0 0
        %593 = vmatprep.subr.bf16.mxu0 0
        %594 = vmatpush1.bf16.msra.mxu0 0
        %595 = vmatprep.subr.bf16.mxu0 0
        %596 = vmatpush1.bf16.msra.mxu0 0
        %597 = vmatprep.mubr.bf16.mxu0 0
        %598 = vmatmul.mubr.bf16.gmra.mrb[0].mxu0 %v415
        %v599 = vpop.f32.mrb[0].mxu0
        %v600 = vadd.f32 %v231, %v599
        %v601 = vpop.f32.mrb[0].mxu0
        %v602 = vadd.f32 %v231, %v601
        %v603 = vpop.f32.mrb[0].mxu0
        %v604 = vpop.f32.mrb[0].mxu0
        %605 = vdwg.mxu0
        %v606 = vsel %vm417, %v477, 0.0
        %v607 = vsel %vm417, %v479, 0.0
        %v608 = vadd.f32 %v606, %v607
        %v609 = vsel %vm417, %v518, 0.0
        %v610 = vadd.f32 %v608, %v609
        %v611 = vsel %vm417, %v520, 0.0
        %v612 = vadd.f32 %v610, %v611
        %v613 = vsel %vm417, %v559, 0.0
        %v614 = vadd.f32 %v612, %v613
        %v615 = vsel %vm417, %v561, 0.0
        %v616 = vadd.f32 %v614, %v615
        %v617 = vsel %vm417, %v600, 0.0
        %v618 = vadd.f32 %v616, %v617
        %v619 = vsel %vm417, %v602, 0.0
        %v620 = vadd.f32 %v618, %v619
        %621 = vadd.xlane.f32.xlu0 %v620
        %v622 = vpop.xlane.xlu0 %621
        %v623 = vrot.slane %v622, 4
        %v624 = vadd.f32 %v622, %v623
        %v625 = vrot.slane %v624, 2
        %v626 = vadd.f32 %v624, %v625
        %v627 = vrot.slane %v626, 1
        %v628 = vadd.f32 %v626, %v627
        %s629 = vtos %v628
        %v630 = vrcp.pop 4096.0
        %s631 = vtos %v630
        %s632 = smul.f32 %s629, %s631
        %v633 = vstv %s632
        %v634 = vsub.f32 %v477, %v633
        %v635 = vsub.f32 %v479, %v633
        %v636 = vsub.f32 %v518, %v633
        %v637 = vsub.f32 %v520, %v633
        %v638 = vsub.f32 %v559, %v633
        %v639 = vsub.f32 %v561, %v633
        %v640 = vsub.f32 %v600, %v633
        %v641 = vsub.f32 %v602, %v633
        %v642 = vmul.f32 %v634, %v634
        %v643 = vmul.f32 %v635, %v635
        %v644 = vmul.f32 %v636, %v636
        %v645 = vmul.f32 %v637, %v637
        %v646 = vmul.f32 %v638, %v638
        %v647 = vmul.f32 %v639, %v639
        %v648 = vmul.f32 %v640, %v640
        %v649 = vmul.f32 %v641, %v641
        %v650 = vsel %vm417, %v642, 0.0
        %v651 = vsel %vm417, %v643, 0.0
        %v652 = vadd.f32 %v650, %v651
        %v653 = vsel %vm417, %v644, 0.0
        %v654 = vadd.f32 %v652, %v653
        %v655 = vsel %vm417, %v645, 0.0
        %v656 = vadd.f32 %v654, %v655
        %v657 = vsel %vm417, %v646, 0.0
        %v658 = vadd.f32 %v656, %v657
        %v659 = vsel %vm417, %v647, 0.0
        %v660 = vadd.f32 %v658, %v659
        %v661 = vsel %vm417, %v648, 0.0
        %v662 = vadd.f32 %v660, %v661
        %v663 = vsel %vm417, %v649, 0.0
        %v664 = vadd.f32 %v662, %v663
        %665 = vadd.xlane.f32.xlu0 %v664
        %v666 = vpop.xlane.xlu0 %665
        %v667 = vrot.slane %v666, 4
        %v668 = vadd.f32 %v666, %v667
        %v669 = vrot.slane %v668, 2
        %v670 = vadd.f32 %v668, %v669
        %v671 = vrot.slane %v670, 1
        %v672 = vadd.f32 %v670, %v671
        %s673 = vtos %v672
        %v674 = vrcp.pop 4096.0
        %s675 = vtos %v674
        %s676 = smul.f32 %s673, %s675
        %s677 = sadd.f32 %s676, 1e-05
        %v678 = vstv %s677
        %v679 = vrsqrt.pop %v678
        %s680 = vtos %v679
        %v681 = vstv %s680
        %v682 = vmul.f32 %v634, %v681
        %v683 = vmul.f32 %v635, %v681
        %v684 = vmul.f32 %v636, %v681
        %v685 = vmul.f32 %v637, %v681
        %v686 = vmul.f32 %v638, %v681
        %v687 = vmul.f32 %v639, %v681
        %v688 = vmul.f32 %v640, %v681
        %v689 = vmul.f32 %v641, %v681
        %s690 = scalar_lea.vmem %s2, 4
        %v691 = vld [vmem:[%s690] sm:$0xf]
        %693 = vset.pattern.permute.xlu0 0
        %694 = vperm.xlu0 %693, %v691
        %v695 = vpop.permute.xlu0 %694
        %v697 = vmul.f32 %v682, %v695
        %v698 = vmul.f32 %v683, %v695
        %v699 = vmul.f32 %v684, %v695
        %v700 = vmul.f32 %v685, %v695
        %v701 = vmul.f32 %v686, %v695
        %v702 = vmul.f32 %v687, %v695
        %v703 = vmul.f32 %v688, %v695
        %v704 = vmul.f32 %v689, %v695
        %s705 = scalar_lea.vmem %s2, 8
        %v706 = vld [vmem:[%s705] sm:$0xf]
        %708 = vset.pattern.permute.xlu0 0
        %709 = vperm.xlu0 %708, %v706
        %v710 = vpop.permute.xlu0 %709
        %v712 = vadd.f32 %v697, %v710
        %v713 = vadd.f32 %v698, %v710
        %v714 = vadd.f32 %v699, %v710
        %v715 = vadd.f32 %v700, %v710
        %v716 = vadd.f32 %v701, %v710
        %v717 = vadd.f32 %v702, %v710
        %v718 = vadd.f32 %v703, %v710
        %v719 = vadd.f32 %v704, %v710
        %v728 = vcombine.low %v712, %v713
        %v729 = vcombine.low %v714, %v715
        %v730 = vcombine.low %v716, %v717
        %v731 = vcombine.low %v718, %v719
        %736 = vst [vmem:[%s188] sm:$0xff] %v728
        %737 = vst [vmem:[%s188 + $0x8] sm:$0xff] %v729
        %738 = vst [vmem:[%s188 + $0x10] sm:$0xff] %v730
        %739 = vst [vmem:[%s188 + $0x18] sm:$0xff] %v731
        %s740 = sand.u32 %s96, 1
        %s741 = scalar_lea.sflag [#allocation4], %s740
        %s742 = sand.u32 %s96, 1
        %s743 = smul.addr %s742, 32
        %s744 = scalar_lea.vmem [#allocation5], %s743
        // Predicated region
        $region37: #{tpu_custom_call.1} parent=31 // pred_check
          %p745 = pneg %p106
        $region38: #{tpu_custom_call.1} parent=31 // pred_check_branch
          %747 = sbr.rel (%p745) target = $region40
        $region39: #{tpu_custom_call.1} parent=31 // pred_region
          %s749 = ssub.s32 512, 512
          %750 = vsyncadd %s741, %s749
          %s751 = smul.addr %s20, 8
          %s752 = smul.addr %s751, 64
          %s753 = scalar_lea.hbm %s3, %s752
          %s755 = sshll.u32 %s744, 4
          %s756 = int_to_ptr.vmem [resolvable:$true] %s755
          %758 = dma.vmem_to_hbm [thread:$0]  %s756, 512, %s753, %s741
        $region40: #{tpu_custom_call.1} parent=31 // pred_fallthru
          _
      $region32: #{tpu_custom_call.1} parent=5 // pred_fallthru
        _
      %p759 = scmp.le.s32.totalorder 2, %s15
      // Predicated region
      $region41: #{tpu_custom_call.1} parent=5 // pred_check
        %p760 = pneg %p759
      $region42: #{tpu_custom_call.1} parent=5 // pred_check_branch
        %762 = sbr.rel (%p760) target = $region44
      $region43: #{tpu_custom_call.1} parent=5 // pred_region
        %s763 = ssub.s32 %s15, 2
        // Predicated region
        $region45: #{tpu_custom_call.1} parent=43 // pred_check
          %p764 = pneg %p112
        $region46: #{tpu_custom_call.1} parent=43 // pred_check_branch
          %766 = sbr.rel (%p764) target = $region48
        $region47: #{tpu_custom_call.1} parent=43 // pred_region
          %s767 = sand.u32 %s97, 1
          %s768 = scalar_lea.sflag [#allocation4], %s767
          %s769 = sand.u32 %s97, 1
          %s770 = smul.addr %s769, 32
          %s771 = scalar_lea.vmem [#allocation5], %s770
          %772 = dma.done %s768, 512
        $region48: #{tpu_custom_call.1} parent=43 // pred_fallthru
          _
      $region44: #{tpu_custom_call.1} parent=5 // pred_fallthru
        _
    $region6: #{tpu_custom_call.1} parent=1 // loop_footer
      %s19 = sadd.s32 1, %s15
    $region7: #{tpu_custom_call.1} parent=1 // loop_footer_branch
      %14 = sbr.rel target = $region3
    $region8: #{tpu_custom_call.1} parent=1 // loop_exit
      _
    %773 = vsyncpa [#allocation3], 1
    %s774 = scalar_lea.sflag [#allocation3], 1
    %775 = vsyncpa %s774, 1
    %776 = vsyncpa [#allocation4], 1
    %s777 = scalar_lea.sflag [#allocation4], 1
    %778 = vsyncpa %s777, 1

</llo_original>
